<compile_context>
chip_gen: v7x
topology: tpu7x:2x2x1
jax: 0.10.0
libtpu: 0.0.40
codegen_flags: <defaults>
</compile_context>

<pallas_src>
import jax
import jax.numpy as jnp
import numpy as np
from jax.experimental import pallas as pl
from jax.experimental.pallas import tpu as pltpu

K_DIM = 64  # `self.k` in the PyTorch module


def _make_kernel(tb, n_actual, n_pad, transpose_out):
    needs_mask = n_pad != n_actual

    def kernel(x_ref, w0c_ref, w1_ref, ob_ref, o_ref):
        w0c = w0c_ref[...]          # (k, c)  bf16  (conv1 folded into linear_0)
        w1 = w1_ref[...]            # (c, k)  bf16
        obias = ob_ref[...]         # (c, 1) or (1, c)  f32  (folded x-branch)

        if needs_mask:              # hoisted: built once per grid step, not per batch
            lane = jax.lax.broadcasted_iota(jnp.int32, (K_DIM, n_pad), 1)
            valid = lane < n_actual

        def body(t, carry):
            # f32 HBM read; bf16 cast on the VPU, hidden under the MXU/DMA.
            x = x_ref[t].astype(jnp.bfloat16)                           # (c, Npad)
            s = jnp.dot(w0c, x, preferred_element_type=jnp.float32)     # (k, Npad)
            if needs_mask:
                s = jnp.where(valid, s, -1e30)
            # softmax over the spatial (lane) axis, exact normalization over k.
            s = s - jnp.max(s, axis=-1, keepdims=True)
            p = jnp.exp(s)
            p = p * pl.reciprocal(jnp.sum(p, axis=-1, keepdims=True), approx=True)
            p = p / (1e-9 + jnp.sum(p, axis=0, keepdims=True))
            pb = p.astype(w1.dtype)
            if transpose_out:
                # (Npad, c): contract k -> lane-dense output, no host transpose.
                o = jax.lax.dot_general(pb, w1, (((0,), (1,)), ((), ())),
                                        preferred_element_type=jnp.float32)
            else:
                o = jnp.dot(w1, pb, preferred_element_type=jnp.float32)  # (c, Npad)
            # NOTE: padded spatial positions are written with obias; they are
            # sliced off on the host.
            o_ref[t] = (o + obias).astype(o_ref.dtype)
            return carry

        if tb == 1:
            body(0, None)
        else:
            jax.lax.fori_loop(0, tb, body, None)

    return kernel


def _vmem_limit_bytes():
    # 3/4 of physical per-core VMEM: ~48 MiB on v7x, ~96 MiB on v5e/v6e.
    try:
        cap = int(pltpu.get_tpu_info().vmem_capacity_bytes)
    except Exception:
        cap = 64 * 1024 * 1024      # conservative fallback (v7x per-TC)
    return (cap * 3) // 4


def _pick_batch_tile(b, c, n_pad, out_bytes, tile_budget):
    # Model actual VMEM residency: double-buffered f32 x-tile and out-tile per
    # batch, plus flat (k, Npad) f32 softmax temps and the small weight buffers.
    per_batch = c * n_pad * (2 * 4 + 2 * out_bytes)
    flat = 4 * K_DIM * n_pad * 4 + 2 * K_DIM * c * 2 + 2 * c * 4
    tb = max(1, min(b, (tile_budget - flat) // max(per_batch, 1)))
    if b >= 2:
        tb = max(1, min(tb, b // 2))   # grid >= 2 so both v7x TensorCores get work
    while b % tb:
        tb -= 1
    return tb
    # TODO(synk): add an N grid axis with a two-pass softmax when a single
    # (1, c, Npad) tile alone exceeds the budget (very large c*N on v7x).


def local_attention_forward(x_nchw, params, ws=1, out_dtype=jnp.float32):
    assert ws == 1, "Pallas kernel implemented for the module default ws=1"
    # TODO(synk): generalize to ws > 1 (needs the grouped (k,N)->(groups,ws*ws,k)
    # reinterpretation plus a real linear_2 / window softmax inside the kernel).
    b, c, h, w = x_nchw.shape
    n = h * w
    n_pad = ((n + 127) // 128) * 128
    hp = jax.lax.Precision.HIGHEST
    transpose_out = (c % 128 == 0)   # lane-dense (N, c) store only if c is 128-aligned

    wc, w0, w1 = params["wc"], params["w0"], params["w1"]
    # Host-side folds (tiny, f32). conv1 bias drops out: the softmax over N is
    # shift-invariant per k-row, so w0 @ bc has no effect on the result.
    w0c = jnp.dot(w0, wc, precision=hp)                                # (k, c)
    obias = jnp.sum(w1, axis=1, keepdims=True) / (1e-9 + float(n))     # (c, 1)
    if transpose_out:
        obias = obias.T                                                # (1, c)

    x_bcn = x_nchw.reshape(b, c, n)                                    # no host cast
    if n_pad != n:
        # rare path: keep the pad (f32) + in-kernel lane mask for non-128-mult H*W
        x_bcn = jnp.pad(x_bcn, ((0, 0), (0, 0), (0, n_pad - n)))

    out_bytes = jnp.dtype(out_dtype).itemsize
    vmem_limit = _vmem_limit_bytes()
    tb = _pick_batch_tile(b, c, n_pad, out_bytes, vmem_limit // 2)

    if transpose_out:
        out_shape = jax.ShapeDtypeStruct((b, n_pad, c), out_dtype)
        out_spec = pl.BlockSpec((tb, n_pad, c), lambda i: (i, 0, 0))
        ob_spec = pl.BlockSpec((1, c), lambda i: (0, 0))
    else:
        out_shape = jax.ShapeDtypeStruct((b, c, n_pad), out_dtype)
        out_spec = pl.BlockSpec((tb, c, n_pad), lambda i: (i, 0, 0))
        ob_spec = pl.BlockSpec((c, 1), lambda i: (0, 0))

    out = pl.pallas_call(
        _make_kernel(tb, n, n_pad, transpose_out),
        out_shape=out_shape,
        grid_spec=pltpu.PrefetchScalarGridSpec(
            num_scalar_prefetch=0,
            grid=(b // tb,),
            in_specs=[
                # TODO(synk): sweep pipeline_mode=pl.Buffered(3) on x if profiling
                # shows exposed per-step DMA.
                pl.BlockSpec((tb, c, n_pad), lambda i: (i, 0, 0)),     # x (f32)
                pl.BlockSpec((K_DIM, c), lambda i: (0, 0)),            # folded linear_0 W
                pl.BlockSpec((c, K_DIM), lambda i: (0, 0)),            # linear_1 W
                ob_spec,                                               # folded x-branch bias
            ],
            out_specs=out_spec,
        ),
        compiler_params=pltpu.CompilerParams(
            dimension_semantics=("parallel",),
            vmem_limit_bytes=vmem_limit,
        ),
    )(x_bcn, w0c.astype(jnp.bfloat16), w1.astype(jnp.bfloat16), obias)

    # PyTorch module returns (b, h*w, c) after the final permute(0, 2, 1).
    if transpose_out:
        return out[:, :n, :] if n_pad != n else out
    out = out[:, :, :n] if n_pad != n else out
    return jnp.transpose(out, (0, 2, 1))


def ref_forward(x, params, ws=1):
    """Pure-JAX transcription of the full PyTorch forward (for correctness check)."""
    wc, bc, w00, w0, w1, w2, b2 = (params[n] for n in
                                   ("wc", "bc", "w00", "w0", "w1", "w2", "b2"))
    b, c, h, w_ = x.shape
    k = K_DIM
    hg, wg = h // ws, w_ // ws
    tg = hg * wg
    N = h * w_
    hp = jax.lax.Precision.HIGHEST

    x0 = jnp.einsum('oc,bchw->bohw', wc, x, precision=hp) + bc.reshape(1, c, 1, 1)
    ind = x0

    xf = x0.reshape(b, c, N)
    xa = jnp.einsum('kc,bcn->bkn', w00, xf, precision=hp)           # (b, k, N)
    xa = xa.reshape(b, hg, ws, wg, ws, k)                           # flat reinterpret (view)
    xa = xa.reshape(b, tg, ws * ws, k)
    xa = jnp.transpose(xa, (0, 1, 3, 2))                            # (b, tg, k, ws*ws)

    indf = ind.reshape(b, c, N)
    ia = jnp.einsum('kc,bcn->bkn', w0, indf, precision=hp)
    ia = jax.nn.softmax(ia, axis=-1)
    ia = ia / (1e-9 + jnp.sum(ia, axis=1, keepdims=True))

    xa = jnp.einsum('btkq,pq->btkp', xa, w2, precision=hp) + b2.reshape(1, 1, 1, ws * ws)
    xa = jax.nn.softmax(xa, axis=-1)
    xa = xa / (1e-9 + jnp.sum(xa, axis=1, keepdims=True))
    xa = jnp.transpose(xa, (0, 1, 3, 2))
    xa = xa.reshape(b, hg, ws, wg, ws, k)
    xa = xa.reshape(b, -1, k)
    xa = jnp.transpose(xa, (0, 2, 1))                               # (b, k, N)

    out = xa + ia
    out = jnp.einsum('ck,bkn->bcn', w1, out, precision=hp)
    return jnp.transpose(out, (0, 2, 1))                            # (b, N, c)


def init_params(key, c, ws=1):
    ks = jax.random.split(key, 7)
    return {
        "wc":  0.3 * jax.random.normal(ks[0], (c, c), jnp.float32),
        "bc":  0.1 * jax.random.normal(ks[1], (c, 1), jnp.float32),
        "w00": 0.3 * jax.random.normal(ks[2], (K_DIM, c), jnp.float32),
        "w0":  0.3 * jax.random.normal(ks[3], (K_DIM, c), jnp.float32),
        "w1":  0.3 * jax.random.normal(ks[4], (c, K_DIM), jnp.float32),
        "w2":  0.3 * jax.random.normal(ks[5], (ws * ws, ws * ws), jnp.float32),
        "b2":  0.1 * jax.random.normal(ks[6], (ws * ws, 1), jnp.float32),
    }


if __name__ == "__main__":
    b, c, h, w = 2, 4, 16, 16
    key = jax.random.PRNGKey(0)
    kx, kp = jax.random.split(key)
    x = jax.random.normal(kx, (b, c, h, w), jnp.float32)
    params = init_params(kp, c)

    out = local_attention_forward(x, params)
    out = jax.block_until_ready(out)
    assert out.shape == (b, h * w, c)

    ref = ref_forward(x, params)
    np.testing.assert_allclose(np.asarray(out), np.asarray(ref), rtol=5e-2, atol=2e-3)
    print("KERNEL_OK")
</pallas_src>

<mosaic_0001>
module attributes {stable_mosaic.version = 11 : i64} {
  func.func @kernel(%arg0: i32, %arg1: memref<1x4x256xf32, #tpu.memory_space<vmem>>, %arg2: memref<64x4xbf16, #tpu.memory_space<vmem>>, %arg3: memref<4x64xbf16, #tpu.memory_space<vmem>>, %arg4: memref<4x1xf32, #tpu.memory_space<vmem>>, %arg5: memref<1x4x256xf32, #tpu.memory_space<vmem>>) attributes {dimension_semantics = [#tpu.dimension_semantics<parallel>], iteration_bounds = array<i64: 2>, scalar_prefetch = 0 : i64, scratch_operands = 0 : i64, tpu.core_type = #tpu.core_type<tc>, window_params = [{transform_indices = @transform_0, window_bounds = array<i64: 1, 4, 256>}, {pipeline_mode = #tpu.pipeline_mode<synchronous>, transform_indices = @transform_1, window_bounds = array<i64: 64, 4>}, {pipeline_mode = #tpu.pipeline_mode<synchronous>, transform_indices = @transform_2, window_bounds = array<i64: 4, 64>}, {pipeline_mode = #tpu.pipeline_mode<synchronous>, transform_indices = @transform_3, window_bounds = array<i64: 4, 1>}, {transform_indices = @transform_4, window_bounds = array<i64: 1, 4, 256>}]} {
    %c0 = arith.constant 0 : index
    %c0_0 = arith.constant 0 : index
    %0 = vector.load %arg2[%c0, %c0_0] : memref<64x4xbf16, #tpu.memory_space<vmem>>, vector<64x4xbf16>
    %c0_1 = arith.constant 0 : index
    %c0_2 = arith.constant 0 : index
    %1 = vector.load %arg3[%c0_1, %c0_2] : memref<4x64xbf16, #tpu.memory_space<vmem>>, vector<4x64xbf16>
    %c0_3 = arith.constant 0 : index
    %c0_4 = arith.constant 0 : index
    %2 = vector.load %arg4[%c0_3, %c0_4] : memref<4x1xf32, #tpu.memory_space<vmem>>, vector<4x1xf32>
    %c0_5 = arith.constant 0 : index
    %c0_6 = arith.constant 0 : index
    %c0_7 = arith.constant 0 : index
    %3 = vector.load %arg1[%c0_5, %c0_6, %c0_7] : memref<1x4x256xf32, #tpu.memory_space<vmem>>, vector<1x4x256xf32>
    %4 = vector.shape_cast %3 : vector<1x4x256xf32> to vector<4x256xf32>
    %5 = arith.truncf %4 : vector<4x256xf32> to vector<4x256xbf16>
    %cst = arith.constant dense<0.000000e+00> : vector<64x256xf32>
    %6 = tpu.matmul %0, %5, %cst {dimension_numbers = #tpu.dot_dimension_numbers<[1], [0], [0], [1], [0, 0, 1, 1], [], []>} : vector<64x4xbf16>, vector<4x256xbf16>, vector<64x256xf32> -> vector<64x256xf32>
    %cst_8 = arith.constant dense<0xFF800000> : vector<64xf32>
    %7 = vector.multi_reduction <maximumf>, %6, %cst_8 [1] : vector<64x256xf32> to vector<64xf32>
    %8 = vector.shape_cast %7 : vector<64xf32> to vector<64x1xf32>
    %9 = vector.broadcast %8 : vector<64x1xf32> to vector<64x256xf32>
    %10 = arith.subf %6, %9 : vector<64x256xf32>
    %11 = math.exp %10 : vector<64x256xf32>
    %cst_9 = arith.constant dense<0.000000e+00> : vector<64xf32>
    %12 = vector.multi_reduction <add>, %11, %cst_9 [1] : vector<64x256xf32> to vector<64xf32>
    %13 = vector.shape_cast %12 : vector<64xf32> to vector<64x1xf32>
    %14 = tpu.reciprocal %13 {approx = true} : vector<64x1xf32> -> vector<64x1xf32>
    %15 = vector.broadcast %14 : vector<64x1xf32> to vector<64x256xf32>
    %16 = arith.mulf %11, %15 : vector<64x256xf32>
    %cst_10 = arith.constant dense<0.000000e+00> : vector<256xf32>
    %17 = vector.multi_reduction <add>, %16, %cst_10 [0] : vector<64x256xf32> to vector<256xf32>
    %18 = vector.shape_cast %17 : vector<256xf32> to vector<1x256xf32>
    %cst_11 = arith.constant 9.99999971E-10 : f32
    %19 = vector.broadcast %cst_11 : f32 to vector<1x256xf32>
    %20 = arith.addf %19, %18 : vector<1x256xf32>
    %21 = vector.broadcast %20 : vector<1x256xf32> to vector<64x256xf32>
    %22 = arith.divf %16, %21 : vector<64x256xf32>
    %23 = arith.truncf %22 : vector<64x256xf32> to vector<64x256xbf16>
    %cst_12 = arith.constant dense<0.000000e+00> : vector<4x256xf32>
    %24 = tpu.matmul %1, %23, %cst_12 {dimension_numbers = #tpu.dot_dimension_numbers<[1], [0], [0], [1], [0, 0, 1, 1], [], []>} : vector<4x64xbf16>, vector<64x256xbf16>, vector<4x256xf32> -> vector<4x256xf32>
    %25 = vector.broadcast %2 : vector<4x1xf32> to vector<4x256xf32>
    %26 = arith.addf %24, %25 : vector<4x256xf32>
    %c0_13 = arith.constant 0 : index
    %c0_14 = arith.constant 0 : index
    %c0_15 = arith.constant 0 : index
    %27 = vector.load %arg5[%c0_13, %c0_14, %c0_15] : memref<1x4x256xf32, #tpu.memory_space<vmem>>, vector<1x4x256xf32>
    %28 = vector.shape_cast %27 : vector<1x4x256xf32> to vector<4x256xf32>
    %29 = vector.shape_cast %26 : vector<4x256xf32> to vector<1x4x256xf32>
    tpu.vector_store %arg5[%c0_13, %c0_14, %c0_15], %29 {strides = array<i32>} : memref<1x4x256xf32, #tpu.memory_space<vmem>>, vector<1x4x256xf32>,
    return
  }
  func.func @transform_0(%arg0: i32) -> (i32, i32, i32) {
    %c0_i32 = arith.constant 0 : i32
    %c0_i32_0 = arith.constant 0 : i32
    %c0_i32_1 = arith.constant 0 : i32
    return %arg0, %c0_i32, %c0_i32_0 : i32, i32, i32
  }
  func.func @transform_1(%arg0: i32) -> (i32, i32) {
    %c0_i32 = arith.constant 0 : i32
    %c0_i32_0 = arith.constant 0 : i32
    %c0_i32_1 = arith.constant 0 : i32
    return %c0_i32, %c0_i32_0 : i32, i32
  }
  func.func @transform_2(%arg0: i32) -> (i32, i32) {
    %c0_i32 = arith.constant 0 : i32
    %c0_i32_0 = arith.constant 0 : i32
    %c0_i32_1 = arith.constant 0 : i32
    return %c0_i32, %c0_i32_0 : i32, i32
  }
  func.func @transform_3(%arg0: i32) -> (i32, i32) {
    %c0_i32 = arith.constant 0 : i32
    %c0_i32_0 = arith.constant 0 : i32
    %c0_i32_1 = arith.constant 0 : i32
    return %c0_i32, %c0_i32_0 : i32, i32
  }
  func.func @transform_4(%arg0: i32) -> (i32, i32, i32) {
    %c0_i32 = arith.constant 0 : i32
    %c0_i32_0 = arith.constant 0 : i32
    %c0_i32_1 = arith.constant 0 : i32
    return %arg0, %c0_i32, %c0_i32_0 : i32, i32, i32
  }
}

</mosaic_0001>

<llo_original>
// kernel: tpu_custom_call.1
$region0: #{tpu_custom_call.1}
  #allocation0 [shape = 'u32[]', space=smem, size = 0x4, offset = 0x4, fixed_abs, tag = 'smem constant byte address 0x4 - core index']
  #allocation1 [shape = 'u32[144,128]{1,0:T(1,128)}', space=vmem, size = 0x12000, scoped, tag = 'internal scratch']
  %s0 = inlined_call_operand.vmem [shape: f32[2,4,256], index: 0, kind: input, shape index: {}]
  %s1 = inlined_call_operand.vmem [shape: bf16[64,4], index: 1, kind: input, shape index: {}]
  %s2 = inlined_call_operand.vmem [shape: bf16[4,64], index: 2, kind: input, shape index: {}]
  %s3 = inlined_call_operand.vmem [shape: f32[4,1], index: 3, kind: input, shape index: {}]
  %s4 = inlined_call_operand.hbm [shape: f32[2,4,256], index: 4, kind: output, shape index: {}]
  %s5 = sld [smem:[#allocation0]]
  $region49: #{tpu_custom_call.1} parent=0
    _
  %s7 = ssub.s32 1, %s5
  %s8 = scalar_select 0, %s7, %s5
  $region1: #{tpu_custom_call.1} parent=0
    #allocation2 [shape = 'u8[8192]{0}', space=vmem, size = 0x2000, scoped, tag = 'output window, operand 0']
    #allocation3 [shape = 's32[2]{0}', space=sflag, size = 0x8, scoped, tag = 'scoped memory for tpu_custom_call.1']
    %9 = vsyncpa [#allocation3], 0
    %s10 = scalar_lea.sflag [#allocation3], 1
    %11 = vsyncpa %s10, 0
    loop: start=0, step=1, limit=4
    $region2: #{tpu_custom_call.1} parent=1 // loop_pre_header
      _
    $region3: #{tpu_custom_call.1} parent=1 // loop_header
      %s13 = sphi 0, %s17
      %p14 = scmp.ge.s32.totalorder %s13, 4
      %s23 = sphi 0, %s25
      %s26 = sphi 0, %s23
      %s27 = sphi 0, %s26
      %s43 = sphi 0, %s27
      %s47 = sphi 0, %s47
      %s49 = sphi 0, %s47
      %s50 = sphi 0, %s49
      %s64 = sphi 0, %s50
      %s68 = sphi 0, %s68
      %s70 = sphi 0, %s68
      %s71 = sphi 0, %s70
      %s85 = sphi 0, %s71
      %s89 = sphi 0, %s89
      %s91 = sphi 0, %s89
      %s92 = sphi 0, %s91
      %s106 = sphi 0, %s92
      %s112 = sphi 0, %s114
      %s115 = sphi 0, %s112
      %s116 = sphi 0, %s115
      %s132 = sphi 0, %s116
    $region4: #{tpu_custom_call.1} parent=1 // loop_header_branch
      %16 = sbr.rel (%p14) target = $region8
    $region5: #{tpu_custom_call.1} parent=1 // loop_body
      %s18 = ssub.s32 %s13, 1
      %s19 = ssub.s32 %s13, 2
      %s20 = sadd.s32 %s13, 1
      %s21 = ssub.s32 %s13, %s20
      %p22 = scmp.eq.s32.totalorder %s21, 0
      %s24 = sadd.s32 %s23, 1
      %s25 = scalar_select %p22, %s23, %s24
      %p28 = pneg %p22
      %p29 = scmp.eq.s32.totalorder %s13, 1
      %p30 = por %p28, %p29
      %p31 = scmp.ne.s32.totalorder %s23, %s26
      %p32 = scmp.eq.s32.totalorder %s13, 0
      %p33 = por %p31, %p32
      %p34 = scmp.ne.s32.totalorder %s23, %s26
      %p35 = scmp.eq.s32.totalorder %s18, 1
      %p36 = por %p34, %p35
      %p37 = scmp.ne.s32.totalorder %s26, %s27
      %p38 = scmp.eq.s32.totalorder %s18, 0
      %p39 = por %p37, %p38
      %p40 = scmp.ne.s32.totalorder %s26, %s27
      %p41 = scmp.eq.s32.totalorder %s19, 1
      %p42 = por %p40, %p41
      %p44 = scmp.ne.s32.totalorder %s27, %s43
      %p45 = scmp.eq.s32.totalorder %s19, 0
      %p46 = por %p44, %p45
      %s48 = sadd.s32 %s47, 1
      %p51 = scmp.eq.s32.totalorder %s13, 1
      %p52 = scmp.ne.s32.totalorder %s47, %s49
      %p53 = scmp.eq.s32.totalorder %s13, 0
      %p54 = por %p52, %p53
      %p55 = scmp.ne.s32.totalorder %s47, %s49
      %p56 = scmp.eq.s32.totalorder %s18, 1
      %p57 = por %p55, %p56
      %p58 = scmp.ne.s32.totalorder %s49, %s50
      %p59 = scmp.eq.s32.totalorder %s18, 0
      %p60 = por %p58, %p59
      %p61 = scmp.ne.s32.totalorder %s49, %s50
      %p62 = scmp.eq.s32.totalorder %s19, 1
      %p63 = por %p61, %p62
      %p65 = scmp.ne.s32.totalorder %s50, %s64
      %p66 = scmp.eq.s32.totalorder %s19, 0
      %p67 = por %p65, %p66
      %s69 = sadd.s32 %s68, 1
      %p72 = scmp.eq.s32.totalorder %s13, 1
      %p73 = scmp.ne.s32.totalorder %s68, %s70
      %p74 = scmp.eq.s32.totalorder %s13, 0
      %p75 = por %p73, %p74
      %p76 = scmp.ne.s32.totalorder %s68, %s70
      %p77 = scmp.eq.s32.totalorder %s18, 1
      %p78 = por %p76, %p77
      %p79 = scmp.ne.s32.totalorder %s70, %s71
      %p80 = scmp.eq.s32.totalorder %s18, 0
      %p81 = por %p79, %p80
      %p82 = scmp.ne.s32.totalorder %s70, %s71
      %p83 = scmp.eq.s32.totalorder %s19, 1
      %p84 = por %p82, %p83
      %p86 = scmp.ne.s32.totalorder %s71, %s85
      %p87 = scmp.eq.s32.totalorder %s19, 0
      %p88 = por %p86, %p87
      %s90 = sadd.s32 %s89, 1
      %p93 = scmp.eq.s32.totalorder %s13, 1
      %p94 = scmp.ne.s32.totalorder %s89, %s91
      %p95 = scmp.eq.s32.totalorder %s13, 0
      %p96 = por %p94, %p95
      %p97 = scmp.ne.s32.totalorder %s89, %s91
      %p98 = scmp.eq.s32.totalorder %s18, 1
      %p99 = por %p97, %p98
      %p100 = scmp.ne.s32.totalorder %s91, %s92
      %p101 = scmp.eq.s32.totalorder %s18, 0
      %p102 = por %p100, %p101
      %p103 = scmp.ne.s32.totalorder %s91, %s92
      %p104 = scmp.eq.s32.totalorder %s19, 1
      %p105 = por %p103, %p104
      %p107 = scmp.ne.s32.totalorder %s92, %s106
      %p108 = scmp.eq.s32.totalorder %s19, 0
      %p109 = por %p107, %p108
      %s110 = ssub.s32 %s13, %s20
      %p111 = scmp.eq.s32.totalorder %s110, 0
      %s113 = sadd.s32 %s112, 1
      %s114 = scalar_select %p111, %s112, %s113
      %p117 = pneg %p111
      %p118 = scmp.eq.s32.totalorder %s13, 1
      %p119 = por %p117, %p118
      %p120 = scmp.ne.s32.totalorder %s112, %s115
      %p121 = scmp.eq.s32.totalorder %s13, 0
      %p122 = por %p120, %p121
      %p123 = scmp.ne.s32.totalorder %s112, %s115
      %p124 = scmp.eq.s32.totalorder %s18, 1
      %p125 = por %p123, %p124
      %p126 = scmp.ne.s32.totalorder %s115, %s116
      %p127 = scmp.eq.s32.totalorder %s18, 0
      %p128 = por %p126, %p127
      %p129 = scmp.ne.s32.totalorder %s115, %s116
      %p130 = scmp.eq.s32.totalorder %s19, 1
      %p131 = por %p129, %p130
      %p133 = scmp.ne.s32.totalorder %s116, %s132
      %p134 = scmp.eq.s32.totalorder %s19, 0
      %p135 = por %p133, %p134
      %p136 = scmp.le.s32.totalorder 1, %s13
      %p137 = scmp.lt.s32.totalorder %s13, 3
      %p138 = pnand %p136, %p137
      %p139 = pneg %p138
      // Predicated region
      $region9: #{tpu_custom_call.1} parent=5 // pred_check
        _
      $region10: #{tpu_custom_call.1} parent=5 // pred_check_branch
        %141 = sbr.rel (%p138) target = $region12
      $region11: #{tpu_custom_call.1} parent=5 // pred_region
        %s142 = ssub.s32 %s13, 1
        // Predicated region
        $region13: #{tpu_custom_call.1} parent=11 // pred_check
          %p143 = pneg %p60
        $region14: #{tpu_custom_call.1} parent=11 // pred_check_branch
          %145 = sbr.rel (%p143) target = $region16
        $region15: #{tpu_custom_call.1} parent=11 // pred_region
          _
        $region16: #{tpu_custom_call.1} parent=11 // pred_fallthru
          _
        // Predicated region
        $region17: #{tpu_custom_call.1} parent=11 // pred_check
          %p146 = pneg %p81
        $region18: #{tpu_custom_call.1} parent=11 // pred_check_branch
          %148 = sbr.rel (%p146) target = $region20
        $region19: #{tpu_custom_call.1} parent=11 // pred_region
          _
        $region20: #{tpu_custom_call.1} parent=11 // pred_fallthru
          _
        // Predicated region
        $region21: #{tpu_custom_call.1} parent=11 // pred_check
          %p149 = pneg %p102
        $region22: #{tpu_custom_call.1} parent=11 // pred_check_branch
          %151 = sbr.rel (%p149) target = $region24
        $region23: #{tpu_custom_call.1} parent=11 // pred_region
          _
        $region24: #{tpu_custom_call.1} parent=11 // pred_fallthru
          _
      $region12: #{tpu_custom_call.1} parent=5 // pred_fallthru
        _
      %p152 = scmp.lt.s32.totalorder %s13, 2
      // Predicated region
      $region25: #{tpu_custom_call.1} parent=5 // pred_check
        %p153 = pneg %p152
      $region26: #{tpu_custom_call.1} parent=5 // pred_check_branch
        %155 = sbr.rel (%p153) target = $region28
      $region27: #{tpu_custom_call.1} parent=5 // pred_region
        // Predicated region
        $region29: #{tpu_custom_call.1} parent=27 // pred_check
          %p156 = pneg %p33
        $region30: #{tpu_custom_call.1} parent=27 // pred_check_branch
          %158 = sbr.rel (%p156) target = $region32
        $region31: #{tpu_custom_call.1} parent=27 // pred_region
          %p159 = scmp.lt.s32.totalorder %s13, 1
          %s160 = scalar_select %p159, %s13, 1
          %s161 = smul.addr %s160, 2
          %s162 = smul.addr %s161, 4
          %s163 = scalar_lea.vmem %s0, %s162
        $region32: #{tpu_custom_call.1} parent=27 // pred_fallthru
          _
      $region28: #{tpu_custom_call.1} parent=5 // pred_fallthru
        _
      %p164 = scmp.le.s32.totalorder 1, %s13
      %p165 = scmp.lt.s32.totalorder %s13, 3
      %p166 = pnand %p164, %p165
      %p167 = pneg %p166
      // Predicated region
      $region33: #{tpu_custom_call.1} parent=5 // pred_check
        _
      $region34: #{tpu_custom_call.1} parent=5 // pred_check_branch
        %169 = sbr.rel (%p166) target = $region36
      $region35: #{tpu_custom_call.1} parent=5 // pred_region
        %s170 = ssub.s32 %s13, 1
        %p171 = scmp.lt.s32.totalorder %s18, 1
        %s172 = scalar_select %p171, %s18, 1
        %s173 = smul.addr %s172, 2
        %s174 = smul.addr %s173, 4
        %s175 = scalar_lea.vmem %s0, %s174
        %p176 = pneg %p39
        %p177 = pneg %p36
        %p178 = pneg %p60
        %p179 = pneg %p57
        %p180 = pneg %p81
        %p181 = pneg %p78
        %p182 = pneg %p102
        %p183 = pneg %p99
        %p184 = pneg %p128
        %p185 = pneg %p125
        %s186 = sand.u32 %s115, 1
        %s187 = scalar_lea.sflag [#allocation3], %s186
        %s188 = sand.u32 %s115, 1
        %s189 = smul.addr %s188, 8
        %s190 = scalar_lea.vmem [#allocation2], %s189
        %p191 = scmp.lt.s32.totalorder %s18, 1
        %s192 = scalar_select %p191, %s18, 1
        %s193 = smul.addr %s192, 2
        %s194 = smul.addr %s193, 4
        %s195 = scalar_lea.vmem %s0, %s194
        %v197 = vld [vmem:[%s1] sm:$0xf]
        %v198 = vld [vmem:[%s1 + $0x4] sm:$0xf]
        %v199 = vld [vmem:[%s1 + $0x8] sm:$0xf]
        %v200 = vld [vmem:[%s1 + $0xc] sm:$0xf]
        %v201 = vld [vmem:[%s1 + $0x10] sm:$0xf]
        %v202 = vld [vmem:[%s1 + $0x14] sm:$0xf]
        %v203 = vld [vmem:[%s1 + $0x18] sm:$0xf]
        %v204 = vld [vmem:[%s1 + $0x1c] sm:$0xf]
        %v205 = vld [vmem:[%s2] sm:$0x3]
        %v206 = vld [vmem:[%s3] sm:$0xf]
        %v207 = vld [vmem:[%s195] sm:$0xff]
        %v209 = vcombine.high %v207, %v207
        %v211 = vpack.c.bf16 %v207, %v207
        %v212 = vpack.c.bf16 %v209, %v209
        %v221 = vunpack.c.l.b16 %v197
        %v222 = vunpack.c.l.b16 %v198
        %v223 = vunpack.c.l.b16 %v199
        %v224 = vunpack.c.l.b16 %v200
        %v225 = vunpack.c.l.b16 %v201
        %v226 = vunpack.c.l.b16 %v202
        %v227 = vunpack.c.l.b16 %v203
        %v228 = vunpack.c.l.b16 %v204
        %v229 = vpack.c.b16 %v222, %v221
        %v230 = vpack.c.b16 %v224, %v223
        %v231 = vpack.c.b16 %v226, %v225
        %v232 = vpack.c.b16 %v228, %v227
        %vm233 = vcmask 31744
        %v235 = vsel %vm233, %v229, 0
        %v238 = vsel %vm233, %v230, 0
        %v241 = vsel %vm233, %v231, 0
        %v244 = vsel %vm233, %v232, 0
        %vm246 = vcmask 1041408
        %v248 = vsel %vm246, %v211, 0
        %v251 = vsel %vm246, %v212, 0
        %253 = vmatprep.subr.bf16.mxu0 %v251
        %254 = vmatpush1.bf16.msra.mxu0 %v248
        %255 = vmatprep.subr.bf16.mxu0 0
        %256 = vmatpush1.bf16.msra.mxu0 0
        %257 = vmatprep.subr.bf16.mxu0 0
        %258 = vmatpush1.bf16.msra.mxu0 0
        %259 = vmatprep.subr.bf16.mxu0 0
        %260 = vmatpush1.bf16.msra.mxu0 0
        %261 = vmatprep.subr.bf16.mxu0 0
        %262 = vmatpush1.bf16.msra.mxu0 0
        %263 = vmatprep.subr.bf16.mxu0 0
        %264 = vmatpush1.bf16.msra.mxu0 0
        %265 = vmatprep.subr.bf16.mxu0 0
        %266 = vmatpush1.bf16.msra.mxu0 0
        %267 = vmatprep.subr.bf16.mxu0 0
        %268 = vmatpush1.bf16.msra.mxu0 0
        %269 = vmatprep.subr.bf16.mxu0 0
        %270 = vmatpush1.bf16.msra.mxu0 0
        %271 = vmatprep.subr.bf16.mxu0 0
        %272 = vmatpush1.bf16.msra.mxu0 0
        %273 = vmatprep.subr.bf16.mxu0 0
        %274 = vmatpush1.bf16.msra.mxu0 0
        %275 = vmatprep.subr.bf16.mxu0 0
        %276 = vmatpush1.bf16.msra.mxu0 0
        %277 = vmatprep.subr.bf16.mxu0 0
        %278 = vmatpush1.bf16.msra.mxu0 0
        %279 = vmatprep.subr.bf16.mxu0 0
        %280 = vmatpush1.bf16.msra.mxu0 0
        %281 = vmatprep.subr.bf16.mxu0 0
        %282 = vmatpush1.bf16.msra.mxu0 0
        %283 = vmatprep.subr.bf16.mxu0 0
        %284 = vmatpush1.bf16.msra.mxu0 0
        %285 = vmatprep.mubr.bf16.mxu0 0
        %286 = vmatmul.mubr.bf16.gmra.mrb[0].mxu0 %v235
        %v287 = vpop.f32.mrb[0].mxu0
        %v288 = vadd.f32 0.0, %v287
        %v289 = vpop.f32.mrb[0].mxu0
        %v290 = vadd.f32 0.0, %v289
        %v291 = vpop.f32.mrb[0].mxu0
        %v292 = vadd.f32 0.0, %v291
        %v293 = vpop.f32.mrb[0].mxu0
        %v294 = vadd.f32 0.0, %v293
        %295 = vmatprep.mubr.bf16.mxu0 0
        %296 = vmatmul.mubr.bf16.gmra.mrb[0].mxu0 %v238
        %v297 = vpop.f32.mrb[0].mxu0
        %v298 = vadd.f32 0.0, %v297
        %v299 = vpop.f32.mrb[0].mxu0
        %v300 = vadd.f32 0.0, %v299
        %v301 = vpop.f32.mrb[0].mxu0
        %v302 = vadd.f32 0.0, %v301
        %v303 = vpop.f32.mrb[0].mxu0
        %v304 = vadd.f32 0.0, %v303
        %305 = vmatprep.mubr.bf16.mxu0 0
        %306 = vmatmul.mubr.bf16.gmra.mrb[0].mxu0 %v241
        %v307 = vpop.f32.mrb[0].mxu0
        %v308 = vadd.f32 0.0, %v307
        %v309 = vpop.f32.mrb[0].mxu0
        %v310 = vadd.f32 0.0, %v309
        %v311 = vpop.f32.mrb[0].mxu0
        %v312 = vadd.f32 0.0, %v311
        %v313 = vpop.f32.mrb[0].mxu0
        %v314 = vadd.f32 0.0, %v313
        %315 = vmatprep.mubr.bf16.mxu0 0
        %316 = vmatmul.mubr.bf16.gmra.mrb[0].mxu0 %v244
        %v317 = vpop.f32.mrb[0].mxu0
        %v318 = vadd.f32 0.0, %v317
        %v319 = vpop.f32.mrb[0].mxu0
        %v320 = vadd.f32 0.0, %v319
        %v321 = vpop.f32.mrb[0].mxu0
        %v322 = vadd.f32 0.0, %v321
        %v323 = vpop.f32.mrb[0].mxu0
        %v324 = vadd.f32 0.0, %v323
        %325 = vdwg.mxu0
        %v326 = vmax.f32 %v288, %v290
        %327 = vmax.xlane.f32.xlu0 %v326
        %v328 = vpop.xlane.xlu0 %327
        %v329 = vmax.f32 %v292, %v294
        %330 = vmax.xlane.f32.xlu0 %v329
        %v331 = vpop.xlane.xlu0 %330
        %v332 = vmax.f32 %v298, %v300
        %333 = vmax.xlane.f32.xlu0 %v332
        %v334 = vpop.xlane.xlu0 %333
        %v335 = vmax.f32 %v302, %v304
        %336 = vmax.xlane.f32.xlu0 %v335
        %v337 = vpop.xlane.xlu0 %336
        %v338 = vmax.f32 %v308, %v310
        %339 = vmax.xlane.f32.xlu0 %v338
        %v340 = vpop.xlane.xlu0 %339
        %v341 = vmax.f32 %v312, %v314
        %342 = vmax.xlane.f32.xlu0 %v341
        %v343 = vpop.xlane.xlu0 %342
        %v344 = vmax.f32 %v318, %v320
        %345 = vmax.xlane.f32.xlu0 %v344
        %v346 = vpop.xlane.xlu0 %345
        %v347 = vmax.f32 %v322, %v324
        %348 = vmax.xlane.f32.xlu0 %v347
        %v349 = vpop.xlane.xlu0 %348
        %v350 = vsub.f32 %v288, %v328
        %v351 = vsub.f32 %v290, %v328
        %v352 = vsub.f32 %v292, %v331
        %v353 = vsub.f32 %v294, %v331
        %v354 = vsub.f32 %v298, %v334
        %v355 = vsub.f32 %v300, %v334
        %v356 = vsub.f32 %v302, %v337
        %v357 = vsub.f32 %v304, %v337
        %v358 = vsub.f32 %v308, %v340
        %v359 = vsub.f32 %v310, %v340
        %v360 = vsub.f32 %v312, %v343
        %v361 = vsub.f32 %v314, %v343
        %v362 = vsub.f32 %v318, %v346
        %v363 = vsub.f32 %v320, %v346
        %v364 = vsub.f32 %v322, %v349
        %v365 = vsub.f32 %v324, %v349
        %v366 = vmul.f32 %v350, 1.442695
        %v367 = vpow.pop %v366
        %v368 = vmul.f32 %v351, 1.442695
        %v369 = vpow.pop %v368
        %v370 = vmul.f32 %v352, 1.442695
        %v371 = vpow.pop %v370
        %v372 = vmul.f32 %v353, 1.442695
        %v373 = vpow.pop %v372
        %v374 = vmul.f32 %v354, 1.442695
        %v375 = vpow.pop %v374
        %v376 = vmul.f32 %v355, 1.442695
        %v377 = vpow.pop %v376
        %v378 = vmul.f32 %v356, 1.442695
        %v379 = vpow.pop %v378
        %v380 = vmul.f32 %v357, 1.442695
        %v381 = vpow.pop %v380
        %v382 = vmul.f32 %v358, 1.442695
        %v383 = vpow.pop %v382
        %v384 = vmul.f32 %v359, 1.442695
        %v385 = vpow.pop %v384
        %v386 = vmul.f32 %v360, 1.442695
        %v387 = vpow.pop %v386
        %v388 = vmul.f32 %v361, 1.442695
        %v389 = vpow.pop %v388
        %v390 = vmul.f32 %v362, 1.442695
        %v391 = vpow.pop %v390
        %v392 = vmul.f32 %v363, 1.442695
        %v393 = vpow.pop %v392
        %v394 = vmul.f32 %v364, 1.442695
        %v395 = vpow.pop %v394
        %v396 = vmul.f32 %v365, 1.442695
        %v397 = vpow.pop %v396
        %v398 = vadd.f32 %v367, %v369
        %399 = vadd.xlane.f32.xlu0 %v398
        %v400 = vpop.xlane.xlu0 %399
        %v401 = vadd.f32 %v371, %v373
        %402 = vadd.xlane.f32.xlu0 %v401
        %v403 = vpop.xlane.xlu0 %402
        %v404 = vadd.f32 %v375, %v377
        %405 = vadd.xlane.f32.xlu0 %v404
        %v406 = vpop.xlane.xlu0 %405
        %v407 = vadd.f32 %v379, %v381
        %408 = vadd.xlane.f32.xlu0 %v407
        %v409 = vpop.xlane.xlu0 %408
        %v410 = vadd.f32 %v383, %v385
        %411 = vadd.xlane.f32.xlu0 %v410
        %v412 = vpop.xlane.xlu0 %411
        %v413 = vadd.f32 %v387, %v389
        %414 = vadd.xlane.f32.xlu0 %v413
        %v415 = vpop.xlane.xlu0 %414
        %v416 = vadd.f32 %v391, %v393
        %417 = vadd.xlane.f32.xlu0 %v416
        %v418 = vpop.xlane.xlu0 %417
        %v419 = vadd.f32 %v395, %v397
        %420 = vadd.xlane.f32.xlu0 %v419
        %v421 = vpop.xlane.xlu0 %420
        %v422 = vrcp.pop %v400
        %v423 = vrcp.pop %v403
        %v424 = vrcp.pop %v406
        %v425 = vrcp.pop %v409
        %v426 = vrcp.pop %v412
        %v427 = vrcp.pop %v415
        %v428 = vrcp.pop %v418
        %v429 = vrcp.pop %v421
        %v430 = vmul.f32 %v367, %v422
        %v431 = vmul.f32 %v369, %v422
        %v432 = vmul.f32 %v371, %v423
        %v433 = vmul.f32 %v373, %v423
        %v434 = vmul.f32 %v375, %v424
        %v435 = vmul.f32 %v377, %v424
        %v436 = vmul.f32 %v379, %v425
        %v437 = vmul.f32 %v381, %v425
        %v438 = vmul.f32 %v383, %v426
        %v439 = vmul.f32 %v385, %v426
        %v440 = vmul.f32 %v387, %v427
        %v441 = vmul.f32 %v389, %v427
        %v442 = vmul.f32 %v391, %v428
        %v443 = vmul.f32 %v393, %v428
        %v444 = vmul.f32 %v395, %v429
        %v445 = vmul.f32 %v397, %v429
        %v446 = vadd.f32 %v430, %v432
        %v447 = vadd.f32 %v446, %v434
        %v448 = vadd.f32 %v447, %v436
        %v449 = vadd.f32 %v448, %v438
        %v450 = vadd.f32 %v449, %v440
        %v451 = vadd.f32 %v450, %v442
        %v452 = vadd.f32 %v451, %v444
        %v453 = vrot.slane %v452, 4
        %v454 = vadd.f32 %v452, %v453
        %v455 = vrot.slane %v454, 2
        %v456 = vadd.f32 %v454, %v455
        %v457 = vrot.slane %v456, 1
        %v458 = vadd.f32 %v456, %v457
        %v459 = vadd.f32 %v431, %v433
        %v460 = vadd.f32 %v459, %v435
        %v461 = vadd.f32 %v460, %v437
        %v462 = vadd.f32 %v461, %v439
        %v463 = vadd.f32 %v462, %v441
        %v464 = vadd.f32 %v463, %v443
        %v465 = vadd.f32 %v464, %v445
        %v466 = vrot.slane %v465, 4
        %v467 = vadd.f32 %v465, %v466
        %v468 = vrot.slane %v467, 2
        %v469 = vadd.f32 %v467, %v468
        %v470 = vrot.slane %v469, 1
        %v471 = vadd.f32 %v469, %v470
        %v472 = vadd.f32 %v458, 1e-09
        %v473 = vadd.f32 %v471, 1e-09
        %v474 = vrcp.pop %v472
        %v475 = vmul.f32 %v430, %v474
        %v476 = vrcp.pop %v473
        %v477 = vmul.f32 %v431, %v476
        %v478 = vmul.f32 %v432, %v474
        %v479 = vmul.f32 %v433, %v476
        %v480 = vmul.f32 %v434, %v474
        %v481 = vmul.f32 %v435, %v476
        %v482 = vmul.f32 %v436, %v474
        %v483 = vmul.f32 %v437, %v476
        %v484 = vmul.f32 %v438, %v474
        %v485 = vmul.f32 %v439, %v476
        %v486 = vmul.f32 %v440, %v474
        %v487 = vmul.f32 %v441, %v476
        %v488 = vmul.f32 %v442, %v474
        %v489 = vmul.f32 %v443, %v476
        %v490 = vmul.f32 %v444, %v474
        %v491 = vmul.f32 %v445, %v476
        %v492 = vpack.c.bf16 %v478, %v475
        %v493 = vpack.c.bf16 %v479, %v477
        %v494 = vpack.c.bf16 %v482, %v480
        %v495 = vpack.c.bf16 %v483, %v481
        %v496 = vpack.c.bf16 %v486, %v484
        %v497 = vpack.c.bf16 %v487, %v485
        %v498 = vpack.c.bf16 %v490, %v488
        %v499 = vpack.c.bf16 %v491, %v489
        %501 = vset.pattern.permute.xlu0 0
        %502 = vperm.xlu0 %501, %v206
        %v503 = vpop.permute.xlu0 %502
        %vm505 = vcmask 523264
        %v507 = vsel %vm505, %v205, 0
        %509 = vmatprep.subr.bf16.mxu0 %v493
        %510 = vmatpush1.bf16.msra.mxu0 %v492
        %511 = vmatprep.subr.bf16.mxu0 %v495
        %512 = vmatpush1.bf16.msra.mxu0 %v494
        %513 = vmatprep.subr.bf16.mxu0 %v497
        %514 = vmatpush1.bf16.msra.mxu0 %v496
        %515 = vmatprep.subr.bf16.mxu0 %v499
        %516 = vmatpush1.bf16.msra.mxu0 %v498
        %517 = vmatprep.subr.bf16.mxu0 0
        %518 = vmatpush1.bf16.msra.mxu0 0
        %519 = vmatprep.subr.bf16.mxu0 0
        %520 = vmatpush1.bf16.msra.mxu0 0
        %521 = vmatprep.subr.bf16.mxu0 0
        %522 = vmatpush1.bf16.msra.mxu0 0
        %523 = vmatprep.subr.bf16.mxu0 0
        %524 = vmatpush1.bf16.msra.mxu0 0
        %525 = vmatprep.subr.bf16.mxu0 0
        %526 = vmatpush1.bf16.msra.mxu0 0
        %527 = vmatprep.subr.bf16.mxu0 0
        %528 = vmatpush1.bf16.msra.mxu0 0
        %529 = vmatprep.subr.bf16.mxu0 0
        %530 = vmatpush1.bf16.msra.mxu0 0
        %531 = vmatprep.subr.bf16.mxu0 0
        %532 = vmatpush1.bf16.msra.mxu0 0
        %533 = vmatprep.subr.bf16.mxu0 0
        %534 = vmatpush1.bf16.msra.mxu0 0
        %535 = vmatprep.subr.bf16.mxu0 0
        %536 = vmatpush1.bf16.msra.mxu0 0
        %537 = vmatprep.subr.bf16.mxu0 0
        %538 = vmatpush1.bf16.msra.mxu0 0
        %539 = vmatprep.subr.bf16.mxu0 0
        %540 = vmatpush1.bf16.msra.mxu0 0
        %541 = vmatprep.mubr.bf16.mxu0 0
        %542 = vmatmul.mubr.bf16.gmra.mrb[0].mxu0 %v507
        %v543 = vpop.f32.mrb[0].mxu0
        %v544 = vadd.f32 %v503, %v543
        %v545 = vpop.f32.mrb[0].mxu0
        %v546 = vadd.f32 %v503, %v545
        %v547 = vpop.f32.mrb[0].mxu0
        %v548 = vpop.f32.mrb[0].mxu0
        %549 = vdwg.mxu0
        %v552 = vcombine.low %v544, %v546
        %554 = vst [vmem:[%s190] sm:$0xff] %v552
        %s555 = sand.u32 %s115, 1
        %s556 = scalar_lea.sflag [#allocation3], %s555
        %s557 = sand.u32 %s115, 1
        %s558 = smul.addr %s557, 8
        %s559 = scalar_lea.vmem [#allocation2], %s558
        // Predicated region
        $region37: #{tpu_custom_call.1} parent=35 // pred_check
          %p560 = pneg %p125
        $region38: #{tpu_custom_call.1} parent=35 // pred_check_branch
          %562 = sbr.rel (%p560) target = $region40
        $region39: #{tpu_custom_call.1} parent=35 // pred_region
          %s564 = ssub.s32 128, 128
          %565 = vsyncadd %s556, %s564
          %s566 = smul.addr %s18, 2
          %s567 = smul.addr %s566, 64
          %s568 = scalar_lea.hbm %s4, %s567
          %s570 = sshll.u32 %s559, 4
          %s571 = int_to_ptr.vmem [resolvable:$true] %s570
          %573 = dma.vmem_to_hbm [thread:$0]  %s571, 128, %s568, %s556
        $region40: #{tpu_custom_call.1} parent=35 // pred_fallthru
          _
      $region36: #{tpu_custom_call.1} parent=5 // pred_fallthru
        _
      %p574 = scmp.le.s32.totalorder 2, %s13
      // Predicated region
      $region41: #{tpu_custom_call.1} parent=5 // pred_check
        %p575 = pneg %p574
      $region42: #{tpu_custom_call.1} parent=5 // pred_check_branch
        %577 = sbr.rel (%p575) target = $region44
      $region43: #{tpu_custom_call.1} parent=5 // pred_region
        %s578 = ssub.s32 %s13, 2
        // Predicated region
        $region45: #{tpu_custom_call.1} parent=43 // pred_check
          %p579 = pneg %p131
        $region46: #{tpu_custom_call.1} parent=43 // pred_check_branch
          %581 = sbr.rel (%p579) target = $region48
        $region47: #{tpu_custom_call.1} parent=43 // pred_region
          %s582 = sand.u32 %s116, 1
          %s583 = scalar_lea.sflag [#allocation3], %s582
          %s584 = sand.u32 %s116, 1
          %s585 = smul.addr %s584, 8
          %s586 = scalar_lea.vmem [#allocation2], %s585
          %587 = dma.done %s583, 128
        $region48: #{tpu_custom_call.1} parent=43 // pred_fallthru
          _
      $region44: #{tpu_custom_call.1} parent=5 // pred_fallthru
        _
    $region6: #{tpu_custom_call.1} parent=1 // loop_footer
      %s17 = sadd.s32 1, %s13
    $region7: #{tpu_custom_call.1} parent=1 // loop_footer_branch
      %12 = sbr.rel target = $region3
    $region8: #{tpu_custom_call.1} parent=1 // loop_exit
      _
    %588 = vsyncpa [#allocation3], 1
    %s589 = scalar_lea.sflag [#allocation3], 1
    %590 = vsyncpa %s589, 1

</llo_original>
